<compile_context>
chip_gen: v5e
topology: v5e:2x2
jax: 0.10.0
libtpu: 0.0.40
codegen_flags: <defaults>
</compile_context>

<pallas_src>
import functools

import jax
import jax.numpy as jnp
from jax.experimental import pallas as pl
from jax.experimental.pallas import tpu as pltpu


_TEMPS_F32 = 10  # conservative count of full-size f32 in-kernel temporaries (VMEM budget)


def _int_pow(x, n):
    """x ** n for a small static positive integer n via repeated multiplies (VPU only)."""
    assert n >= 1
    result = None
    while n > 0:
        if n & 1:
            result = x if result is None else result * x
        n >>= 1
        if n:
            x = x * x
    return result


def _plan_tiles(C, R, in_bytes, N, tile_rows=None):
    """Pick rows-per-tile (multiple of 8, or full extent) and the number of row tiles."""
    if tile_rows is None:
        target_block = 2 << 20   # ~2 MiB streamed per input block per grid step
        work_budget = 36 << 20   # double-buffered inputs + f32 temporaries (fits v7x/v5e)
        per_row_stream = C * 128 * in_bytes
        per_row_work = C * 128 * (4 * in_bytes + _TEMPS_F32 * 4)
        tr_max = min(target_block // per_row_stream, work_budget // per_row_work)
        tr_max = max(8, (int(tr_max) // 8) * 8)
    else:
        tr_max = max(8, (int(tile_rows) // 8) * 8)

    if R <= tr_max:
        return R, 1                              # full-extent block (no mult-of-8 rule)
    num_t = -(-R // tr_max)
    num_t = max(num_t, -(-4 // N))               # best-effort >=4 grid points (v7x: 2 TCs)
    tr = ((-(-R // num_t) + 7) // 8) * 8
    num_t = -(-R // tr)
    return tr, num_t


def _focal_kernel(x_ref, y_ref, w_ref, out_ref, *, gamma, use_alpha, tile_rows, out_rows):
    # x_ref / y_ref: (1, C, TR, 128) in native dtype; upcast once in registers.
    x = x_ref[...].astype(jnp.float32)
    y = y_ref[...].astype(jnp.float32)

    # Channel axis (1) is not a vreg layout axis in this (rows, 128) layout: the max/sum
    # over channels are C-1 elementwise VPU ops over fully dense vregs (no XLU work).
    m = jnp.max(x, axis=1, keepdims=True)
    z = x - m
    e = jnp.exp(z)                               # single full-size exp, reused for p
    s = jnp.sum(e, axis=1, keepdims=True)        # (1, 1, TR, 128)
    log_s = jnp.log(s)

    if use_alpha:
        w = w_ref[...].astype(jnp.float32)       # tiny (1, C, 1, 1), broadcast in-kernel

    if gamma > 0:
        log_p = z - log_s
        # reciprocal only on the C-reduced s (1/C of the block), + one Newton step.
        r = pl.reciprocal(s, approx=True)
        r = r * (2.0 - s * r)
        p = e * r
        base = jnp.maximum(1.0 - p, 0.0)         # clamp fp rounding when p ~ 1
        if float(gamma).is_integer():
            focal = _int_pow(base, int(gamma))   # VPU multiplies, no pow lowering
        else:
            focal = base ** gamma
        loss = -(y * log_p) * focal
        if use_alpha:
            loss = loss * w
        csum = jnp.sum(loss, axis=1, keepdims=True)          # (1, 1, TR, 128)
    else:
        # gamma == 0 fast path: sum_c(w*y*log_p) = sum_c(w*y*z) - log(s) * sum_c(w*y)
        yw = y * w if use_alpha else y
        csum = -(jnp.sum(yw * z, axis=1, keepdims=True)
                 - log_s * jnp.sum(yw, axis=1, keepdims=True))

    # Fold per-pixel sums over full (out_rows, 128) vreg chunks -> lane-dense partial out.
    if tile_rows == out_rows:
        acc = csum
    else:
        acc = csum[:, :, 0:out_rows, :]
        for k in range(1, tile_rows // out_rows):
            acc = acc + csum[:, :, k * out_rows:(k + 1) * out_rows, :]
    out_ref[...] = acc


def focal_loss_pallas(logits, y, gamma=0, alpha=None, tile_rows=None):
    """Pallas TPU implementation of FocalLoss.forward(logits, y) for NCHW inputs."""
    N, C, H, W = logits.shape
    HW = H * W
    in_bytes = jnp.dtype(logits.dtype).itemsize
    R = -(-HW // 128)                            # spatial rows of 128 lanes

    tr, num_t = _plan_tiles(C, R, in_bytes, N, tile_rows)
    out_rows = 8 if (tr >= 8 and tr % 8 == 0) else tr
    HW_pad = num_t * tr * 128

    # No dtype cast here: stream inputs in their native dtype (bf16 halves HBM bytes).
    x = logits.reshape(N, C, HW)
    tgt = y.reshape(N, C, HW)
    if HW_pad != HW:
        # zero-pad: padded pixels have y == 0 and a finite log_softmax -> contribute 0,
        # so no in-kernel masking is needed anywhere.
        pad = ((0, 0), (0, 0), (0, HW_pad - HW))
        x = jnp.pad(x, pad)
        tgt = jnp.pad(tgt, pad)
    x = x.reshape(N, C, num_t * tr, 128)
    tgt = tgt.reshape(N, C, num_t * tr, 128)

    use_alpha = alpha is not None
    if use_alpha:
        w = jnp.array([1.0 - alpha] + [alpha] * (C - 1), dtype=jnp.float32)
    else:
        w = jnp.ones((C,), dtype=jnp.float32)
    w = w.reshape(1, C, 1, 1)                    # tiny per-channel weights, no HW slab

    # Explicit VMEM budget: double-buffered streamed inputs + f32 temporaries + output.
    block_in = C * tr * 128 * in_bytes
    vmem_est = (2 * 2 * block_in
                + _TEMPS_F32 * C * tr * 128 * 4
                + 2 * out_rows * 128 * 4
                + (2 << 20))
    vmem_limit = int(min(max(vmem_est, 16 << 20), 48 << 20))   # <= 48 MiB: safe on v7x

    kernel = functools.partial(
        _focal_kernel, gamma=gamma, use_alpha=use_alpha,
        tile_rows=tr, out_rows=out_rows)

    partials = pl.pallas_call(
        kernel,
        out_shape=jax.ShapeDtypeStruct((N, num_t, out_rows, 128), jnp.float32),
        grid_spec=pltpu.PrefetchScalarGridSpec(
            num_scalar_prefetch=0,
            grid=(N, num_t),
            in_specs=[
                pl.BlockSpec((1, C, tr, 128), lambda n, t: (n, 0, t, 0)),
                pl.BlockSpec((1, C, tr, 128), lambda n, t: (n, 0, t, 0)),
                pl.BlockSpec((1, C, 1, 1), lambda n, t: (0, 0, 0, 0)),
            ],
            out_specs=pl.BlockSpec((1, 1, out_rows, 128), lambda n, t: (n, t, 0, 0)),
        ),
        compiler_params=pltpu.CompilerParams(
            # no cross-iteration state -> both axes parallel (megacore / v7x 2-TC friendly)
            dimension_semantics=("parallel", "parallel"),
            vmem_limit_bytes=vmem_limit,
        ),
    )(x, tgt, w)

    # final tiny reduction + mean in plain JAX:  sum(loss) / (N * H * W)
    return jnp.sum(partials) / jnp.float32(N * HW)


def focal_loss_ref(logits, y, gamma=0, alpha=None):
    """Plain-JAX reference mirroring the PyTorch module exactly."""
    log_p = jax.nn.log_softmax(logits, axis=1)
    loss = -(y * log_p)
    if gamma > 0:
        loss = loss * (1.0 - jnp.exp(log_p)) ** gamma
    if alpha is not None:
        C = y.shape[1]
        w = jnp.array([1.0 - alpha] + [alpha] * (C - 1), dtype=loss.dtype)
        loss = loss * w.reshape((-1,) + (1,) * (y.ndim - 2))
    return loss.sum(axis=1).mean()


if __name__ == "__main__":
    key = jax.random.PRNGKey(0)
    k1, k2, k3, k4, k5, k6 = jax.random.split(key, 6)

    # Test A: focal term + alpha, f32, HW = 256 (multiple of 128, single full-extent tile).
    N, C, H, W = 2, 4, 16, 16
    logits = jax.random.normal(k1, (N, C, H, W), dtype=jnp.float32)
    y = jax.nn.softmax(jax.random.normal(k2, (N, C, H, W), dtype=jnp.float32), axis=1)
    out = jax.block_until_ready(focal_loss_pallas(logits, y, gamma=2, alpha=0.25))
    ref = focal_loss_ref(logits, y, gamma=2, alpha=0.25)
    assert jnp.allclose(out, ref, rtol=1e-4, atol=1e-6), (out, ref)

    # Test B: plain CE fast path (gamma=0, no alpha), ragged HW = 130 -> zero-padded to 256.
    N2, C2, H2, W2 = 2, 4, 10, 13
    logits2 = jax.random.normal(k3, (N2, C2, H2, W2), dtype=jnp.float32)
    y2 = jax.nn.softmax(jax.random.normal(k4, (N2, C2, H2, W2), dtype=jnp.float32), axis=1)
    out2 = jax.block_until_ready(focal_loss_pallas(logits2, y2, gamma=0, alpha=None))
    ref2 = focal_loss_ref(logits2, y2, gamma=0, alpha=None)
    assert jnp.allclose(out2, ref2, rtol=1e-4, atol=1e-6), (out2, ref2)

    # Test C: bf16 native-dtype streaming, HW = 2048 (R=16 rows -> in-kernel vreg fold).
    N3, C3, H3, W3 = 2, 4, 32, 64
    logits3 = jax.random.normal(k5, (N3, C3, H3, W3), dtype=jnp.float32).astype(jnp.bfloat16)
    y3 = jax.nn.softmax(jax.random.normal(k6, (N3, C3, H3, W3), dtype=jnp.float32),
                        axis=1).astype(jnp.bfloat16)
    out3 = jax.block_until_ready(focal_loss_pallas(logits3, y3, gamma=2, alpha=None))
    ref3 = focal_loss_ref(logits3.astype(jnp.float32), y3.astype(jnp.float32),
                          gamma=2, alpha=None)
    assert jnp.allclose(out3, ref3, rtol=1e-4, atol=1e-6), (out3, ref3)

    # Test D: multi-tile grid along rows (tile_rows=8 -> num_t=2), gamma=1 + alpha.
    logits4 = logits3.astype(jnp.float32)
    y4 = y3.astype(jnp.float32)
    out4 = jax.block_until_ready(
        focal_loss_pallas(logits4, y4, gamma=1, alpha=0.3, tile_rows=8))
    ref4 = focal_loss_ref(logits4, y4, gamma=1, alpha=0.3)
    assert jnp.allclose(out4, ref4, rtol=1e-4, atol=1e-6), (out4, ref4)

    print("KERNEL_OK")
</pallas_src>

<mosaic_0001>
module attributes {stable_mosaic.version = 11 : i64} {
  func.func @_focal_kernel(%arg0: i32, %arg1: i32, %arg2: memref<1x4x2x128xf32, #tpu.memory_space<vmem>>, %arg3: memref<1x4x2x128xf32, #tpu.memory_space<vmem>>, %arg4: memref<1x4x1x1xf32, #tpu.memory_space<vmem>>, %arg5: memref<1x1x2x128xf32, #tpu.memory_space<vmem>>) attributes {dimension_semantics = [#tpu.dimension_semantics<parallel>, #tpu.dimension_semantics<parallel>], iteration_bounds = array<i64: 2, 1>, scalar_prefetch = 0 : i64, scratch_operands = 0 : i64, tpu.core_type = #tpu.core_type<tc>, window_params = [{transform_indices = @transform_0, window_bounds = array<i64: 1, 4, 2, 128>}, {transform_indices = @transform_1, window_bounds = array<i64: 1, 4, 2, 128>}, {pipeline_mode = #tpu.pipeline_mode<synchronous>, transform_indices = @transform_2, window_bounds = array<i64: 1, 4, 1, 1>}, {transform_indices = @transform_3, window_bounds = array<i64: 1, 1, 2, 128>}]} {
    %c0 = arith.constant 0 : index
    %c0_0 = arith.constant 0 : index
    %c0_1 = arith.constant 0 : index
    %c0_2 = arith.constant 0 : index
    %0 = vector.load %arg2[%c0, %c0_0, %c0_1, %c0_2] : memref<1x4x2x128xf32, #tpu.memory_space<vmem>>, vector<1x4x2x128xf32>
    %c0_3 = arith.constant 0 : index
    %c0_4 = arith.constant 0 : index
    %c0_5 = arith.constant 0 : index
    %c0_6 = arith.constant 0 : index
    %1 = vector.load %arg3[%c0_3, %c0_4, %c0_5, %c0_6] : memref<1x4x2x128xf32, #tpu.memory_space<vmem>>, vector<1x4x2x128xf32>
    %cst = arith.constant dense<0xFF800000> : vector<1x2x128xf32>
    %2 = vector.multi_reduction <maximumf>, %0, %cst [1] : vector<1x4x2x128xf32> to vector<1x2x128xf32>
    %3 = vector.shape_cast %2 : vector<1x2x128xf32> to vector<1x1x2x128xf32>
    %4 = vector.broadcast %3 : vector<1x1x2x128xf32> to vector<1x4x2x128xf32>
    %5 = arith.subf %0, %4 : vector<1x4x2x128xf32>
    %6 = math.exp %5 : vector<1x4x2x128xf32>
    %cst_7 = arith.constant dense<0.000000e+00> : vector<1x2x128xf32>
    %7 = vector.multi_reduction <add>, %6, %cst_7 [1] : vector<1x4x2x128xf32> to vector<1x2x128xf32>
    %8 = vector.shape_cast %7 : vector<1x2x128xf32> to vector<1x1x2x128xf32>
    %9 = math.log %8 : vector<1x1x2x128xf32>
    %c0_8 = arith.constant 0 : index
    %c0_9 = arith.constant 0 : index
    %c0_10 = arith.constant 0 : index
    %c0_11 = arith.constant 0 : index
    %10 = vector.load %arg4[%c0_8, %c0_9, %c0_10, %c0_11] : memref<1x4x1x1xf32, #tpu.memory_space<vmem>>, vector<1x4x1x1xf32>
    %11 = vector.broadcast %9 : vector<1x1x2x128xf32> to vector<1x4x2x128xf32>
    %12 = arith.subf %5, %11 : vector<1x4x2x128xf32>
    %13 = tpu.reciprocal %8 {approx = true} : vector<1x1x2x128xf32> -> vector<1x1x2x128xf32>
    %14 = arith.mulf %8, %13 : vector<1x1x2x128xf32>
    %cst_12 = arith.constant 2.000000e+00 : f32
    %15 = vector.broadcast %cst_12 : f32 to vector<1x1x2x128xf32>
    %16 = arith.subf %15, %14 : vector<1x1x2x128xf32>
    %17 = arith.mulf %13, %16 : vector<1x1x2x128xf32>
    %18 = vector.broadcast %17 : vector<1x1x2x128xf32> to vector<1x4x2x128xf32>
    %19 = arith.mulf %6, %18 : vector<1x4x2x128xf32>
    %cst_13 = arith.constant 1.000000e+00 : f32
    %20 = vector.broadcast %cst_13 : f32 to vector<1x4x2x128xf32>
    %21 = arith.subf %20, %19 : vector<1x4x2x128xf32>
    %cst_14 = arith.constant 0.000000e+00 : f32
    %22 = vector.broadcast %cst_14 : f32 to vector<1x4x2x128xf32>
    %23 = arith.maximumf %21, %22 : vector<1x4x2x128xf32>
    %24 = arith.mulf %23, %23 : vector<1x4x2x128xf32>
    %25 = arith.mulf %1, %12 : vector<1x4x2x128xf32>
    %cst_15 = arith.constant 0.000000e+00 : f32
    %26 = vector.broadcast %cst_15 : f32 to vector<1x4x2x128xf32>
    %27 = arith.subf %26, %25 : vector<1x4x2x128xf32>
    %28 = arith.mulf %27, %24 : vector<1x4x2x128xf32>
    %29 = vector.broadcast %10 : vector<1x4x1x1xf32> to vector<1x4x2x128xf32>
    %30 = arith.mulf %28, %29 : vector<1x4x2x128xf32>
    %cst_16 = arith.constant dense<0.000000e+00> : vector<1x2x128xf32>
    %31 = vector.multi_reduction <add>, %30, %cst_16 [1] : vector<1x4x2x128xf32> to vector<1x2x128xf32>
    %32 = vector.shape_cast %31 : vector<1x2x128xf32> to vector<1x1x2x128xf32>
    %c0_17 = arith.constant 0 : index
    %c0_18 = arith.constant 0 : index
    %c0_19 = arith.constant 0 : index
    %c0_20 = arith.constant 0 : index
    %33 = vector.load %arg5[%c0_17, %c0_18, %c0_19, %c0_20] : memref<1x1x2x128xf32, #tpu.memory_space<vmem>>, vector<1x1x2x128xf32>
    tpu.vector_store %arg5[%c0_17, %c0_18, %c0_19, %c0_20], %32 {strides = array<i32>} : memref<1x1x2x128xf32, #tpu.memory_space<vmem>>, vector<1x1x2x128xf32>,
    return
  }
  func.func @transform_0(%arg0: i32, %arg1: i32) -> (i32, i32, i32, i32) {
    %c0_i32 = arith.constant 0 : i32
    %c0_i32_0 = arith.constant 0 : i32
    %c0_i32_1 = arith.constant 0 : i32
    return %arg0, %c0_i32, %arg1, %c0_i32_0 : i32, i32, i32, i32
  }
  func.func @transform_1(%arg0: i32, %arg1: i32) -> (i32, i32, i32, i32) {
    %c0_i32 = arith.constant 0 : i32
    %c0_i32_0 = arith.constant 0 : i32
    %c0_i32_1 = arith.constant 0 : i32
    return %arg0, %c0_i32, %arg1, %c0_i32_0 : i32, i32, i32, i32
  }
  func.func @transform_2(%arg0: i32, %arg1: i32) -> (i32, i32, i32, i32) {
    %c0_i32 = arith.constant 0 : i32
    %c0_i32_0 = arith.constant 0 : i32
    %c0_i32_1 = arith.constant 0 : i32
    %c0_i32_2 = arith.constant 0 : i32
    %c0_i32_3 = arith.constant 0 : i32
    return %c0_i32, %c0_i32_0, %c0_i32_1, %c0_i32_2 : i32, i32, i32, i32
  }
  func.func @transform_3(%arg0: i32, %arg1: i32) -> (i32, i32, i32, i32) {
    %c0_i32 = arith.constant 0 : i32
    %c0_i32_0 = arith.constant 0 : i32
    %c0_i32_1 = arith.constant 0 : i32
    return %arg0, %arg1, %c0_i32, %c0_i32_0 : i32, i32, i32, i32
  }
}

</mosaic_0001>

<llo_original>
// kernel: tpu_custom_call.1
$region0: #{tpu_custom_call.1}
  #allocation0 [shape = 'u32[]', space=smem, size = 0x4, offset = 0x4, fixed_abs, tag = 'smem constant byte address 0x4 - core index']
  #allocation1 [shape = 'u32[72,128]{1,0:T(1,128)}', space=vmem, size = 0x9000, scoped, tag = 'internal scratch']
  %s0 = inlined_call_operand.hbm [shape: f32[2,4,2,128], index: 0, kind: input, shape index: {}]
  %s1 = inlined_call_operand.hbm [shape: f32[2,4,2,128], index: 1, kind: input, shape index: {}]
  %s2 = inlined_call_operand.vmem [shape: f32[1,4,1,1], index: 2, kind: input, shape index: {}]
  %s3 = inlined_call_operand.hbm [shape: f32[2,1,2,128], index: 3, kind: output, shape index: {}]
  %s4 = sld [smem:[#allocation0]]
  $region53: #{tpu_custom_call.1} parent=0
    _
  %s6 = ssub.s32 1, %s4
  %s7 = scalar_select 0, %s6, %s4
  $region1: #{tpu_custom_call.1} parent=0
    #allocation2 [shape = 'u8[8192]{0}', space=vmem, size = 0x2000, scoped, tag = 'input window, operand 0']
    #allocation3 [shape = 's32[2]{0}', space=sflag, size = 0x8, scoped, tag = 'scoped memory for tpu_custom_call.1']
    #allocation4 [shape = 's32[2]{0}', space=sflag, size = 0x8, scoped, tag = 'scoped memory for tpu_custom_call.1']
    #allocation5 [shape = 'u8[8192]{0}', space=vmem, size = 0x2000, scoped, tag = 'input window, operand 1']
    #allocation6 [shape = 's32[2]{0}', space=sflag, size = 0x8, scoped, tag = 'scoped memory for tpu_custom_call.1']
    #allocation7 [shape = 'u8[2048]{0}', space=vmem, size = 0x800, scoped, tag = 'output window, operand 0']
    %8 = vsyncpa [#allocation3], 0
    %s9 = scalar_lea.sflag [#allocation3], 1
    %10 = vsyncpa %s9, 0
    %11 = vsyncpa [#allocation6], 0
    %s12 = scalar_lea.sflag [#allocation6], 1
    %13 = vsyncpa %s12, 0
    %14 = vsyncpa [#allocation4], 0
    %s15 = scalar_lea.sflag [#allocation4], 1
    %16 = vsyncpa %s15, 0
    loop: start=0, step=1, limit=4
    $region2: #{tpu_custom_call.1} parent=1 // loop_pre_header
      _
    $region3: #{tpu_custom_call.1} parent=1 // loop_header
      %s18 = sphi 0, %s22
      %p19 = scmp.ge.s32.totalorder %s18, 4
      %s25 = sphi 0, %s37
      %s26 = sphi 0, %s33
      %s27 = sphi 0, %s25
      %s28 = sphi 0, %s26
      %s29 = sphi 0, %s27
      %s30 = sphi 0, %s28
      %s42 = sphi 0, %s44
      %s45 = sphi 0, %s42
      %s46 = sphi 0, %s45
      %s62 = sphi 0, %s46
      %s70 = sphi 0, %s72
      %s73 = sphi 0, %s70
      %s74 = sphi 0, %s73
      %s90 = sphi 0, %s74
      %s94 = sphi 0, %s94
      %s96 = sphi 0, %s94
      %s97 = sphi 0, %s96
      %s111 = sphi 0, %s97
      %s119 = sphi 0, %s121
      %s122 = sphi 0, %s119
      %s123 = sphi 0, %s122
      %s139 = sphi 0, %s123
    $region4: #{tpu_custom_call.1} parent=1 // loop_header_branch
      %21 = sbr.rel (%p19) target = $region8
    $region5: #{tpu_custom_call.1} parent=1 // loop_body
      %s23 = ssub.s32 %s18, 1
      %s24 = ssub.s32 %s18, 2
      %s31 = sadd.s32 1, %s26
      %p32 = scmp.ge.s32.totalorder %s31, 1
      %s33 = scalar_select %p32, 0, %s31
      %s34 = sadd.s32 1, %s25
      %s35 = scalar_select %p32, %s34, %s25
      %p36 = scmp.ge.s32.totalorder %s35, 2
      %s37 = scalar_select %p36, 0, %s35
      %s38 = ssub.s32 %s25, %s37
      %s39 = ssub.s32 %s26, %s33
      %s40 = sor.u32 %s38, %s39
      %p41 = scmp.eq.s32.totalorder %s40, 0
      %s43 = sadd.s32 %s42, 1
      %s44 = scalar_select %p41, %s42, %s43
      %p47 = pneg %p41
      %p48 = scmp.eq.s32.totalorder %s18, 1
      %p49 = por %p47, %p48
      %p50 = scmp.ne.s32.totalorder %s42, %s45
      %p51 = scmp.eq.s32.totalorder %s18, 0
      %p52 = por %p50, %p51
      %p53 = scmp.ne.s32.totalorder %s42, %s45
      %p54 = scmp.eq.s32.totalorder %s23, 1
      %p55 = por %p53, %p54
      %p56 = scmp.ne.s32.totalorder %s45, %s46
      %p57 = scmp.eq.s32.totalorder %s23, 0
      %p58 = por %p56, %p57
      %p59 = scmp.ne.s32.totalorder %s45, %s46
      %p60 = scmp.eq.s32.totalorder %s24, 1
      %p61 = por %p59, %p60
      %p63 = scmp.ne.s32.totalorder %s46, %s62
      %p64 = scmp.eq.s32.totalorder %s24, 0
      %p65 = por %p63, %p64
      %s66 = ssub.s32 %s25, %s37
      %s67 = ssub.s32 %s26, %s33
      %s68 = sor.u32 %s66, %s67
      %p69 = scmp.eq.s32.totalorder %s68, 0
      %s71 = sadd.s32 %s70, 1
      %s72 = scalar_select %p69, %s70, %s71
      %p75 = pneg %p69
      %p76 = scmp.eq.s32.totalorder %s18, 1
      %p77 = por %p75, %p76
      %p78 = scmp.ne.s32.totalorder %s70, %s73
      %p79 = scmp.eq.s32.totalorder %s18, 0
      %p80 = por %p78, %p79
      %p81 = scmp.ne.s32.totalorder %s70, %s73
      %p82 = scmp.eq.s32.totalorder %s23, 1
      %p83 = por %p81, %p82
      %p84 = scmp.ne.s32.totalorder %s73, %s74
      %p85 = scmp.eq.s32.totalorder %s23, 0
      %p86 = por %p84, %p85
      %p87 = scmp.ne.s32.totalorder %s73, %s74
      %p88 = scmp.eq.s32.totalorder %s24, 1
      %p89 = por %p87, %p88
      %p91 = scmp.ne.s32.totalorder %s74, %s90
      %p92 = scmp.eq.s32.totalorder %s24, 0
      %p93 = por %p91, %p92
      %s95 = sadd.s32 %s94, 1
      %p98 = scmp.eq.s32.totalorder %s18, 1
      %p99 = scmp.ne.s32.totalorder %s94, %s96
      %p100 = scmp.eq.s32.totalorder %s18, 0
      %p101 = por %p99, %p100
      %p102 = scmp.ne.s32.totalorder %s94, %s96
      %p103 = scmp.eq.s32.totalorder %s23, 1
      %p104 = por %p102, %p103
      %p105 = scmp.ne.s32.totalorder %s96, %s97
      %p106 = scmp.eq.s32.totalorder %s23, 0
      %p107 = por %p105, %p106
      %p108 = scmp.ne.s32.totalorder %s96, %s97
      %p109 = scmp.eq.s32.totalorder %s24, 1
      %p110 = por %p108, %p109
      %p112 = scmp.ne.s32.totalorder %s97, %s111
      %p113 = scmp.eq.s32.totalorder %s24, 0
      %p114 = por %p112, %p113
      %s115 = ssub.s32 %s25, %s37
      %s116 = ssub.s32 %s26, %s33
      %s117 = sor.u32 %s115, %s116
      %p118 = scmp.eq.s32.totalorder %s117, 0
      %s120 = sadd.s32 %s119, 1
      %s121 = scalar_select %p118, %s119, %s120
      %p124 = pneg %p118
      %p125 = scmp.eq.s32.totalorder %s18, 1
      %p126 = por %p124, %p125
      %p127 = scmp.ne.s32.totalorder %s119, %s122
      %p128 = scmp.eq.s32.totalorder %s18, 0
      %p129 = por %p127, %p128
      %p130 = scmp.ne.s32.totalorder %s119, %s122
      %p131 = scmp.eq.s32.totalorder %s23, 1
      %p132 = por %p130, %p131
      %p133 = scmp.ne.s32.totalorder %s122, %s123
      %p134 = scmp.eq.s32.totalorder %s23, 0
      %p135 = por %p133, %p134
      %p136 = scmp.ne.s32.totalorder %s122, %s123
      %p137 = scmp.eq.s32.totalorder %s24, 1
      %p138 = por %p136, %p137
      %p140 = scmp.ne.s32.totalorder %s123, %s139
      %p141 = scmp.eq.s32.totalorder %s24, 0
      %p142 = por %p140, %p141
      %p143 = scmp.le.s32.totalorder 1, %s18
      %p144 = scmp.lt.s32.totalorder %s18, 3
      %p145 = pnand %p143, %p144
      %p146 = pneg %p145
      // Predicated region
      $region9: #{tpu_custom_call.1} parent=5 // pred_check
        _
      $region10: #{tpu_custom_call.1} parent=5 // pred_check_branch
        %148 = sbr.rel (%p145) target = $region12
      $region11: #{tpu_custom_call.1} parent=5 // pred_region
        %s149 = ssub.s32 %s18, 1
        // Predicated region
        $region13: #{tpu_custom_call.1} parent=11 // pred_check
          %p150 = pneg %p107
        $region14: #{tpu_custom_call.1} parent=11 // pred_check_branch
          %152 = sbr.rel (%p150) target = $region16
        $region15: #{tpu_custom_call.1} parent=11 // pred_region
          _
        $region16: #{tpu_custom_call.1} parent=11 // pred_fallthru
          _
      $region12: #{tpu_custom_call.1} parent=5 // pred_fallthru
        _
      %p153 = scmp.lt.s32.totalorder %s18, 2
      // Predicated region
      $region17: #{tpu_custom_call.1} parent=5 // pred_check
        %p154 = pneg %p153
      $region18: #{tpu_custom_call.1} parent=5 // pred_check_branch
        %156 = sbr.rel (%p154) target = $region20
      $region19: #{tpu_custom_call.1} parent=5 // pred_region
        // Predicated region
        $region21: #{tpu_custom_call.1} parent=19 // pred_check
          %p157 = pneg %p52
        $region22: #{tpu_custom_call.1} parent=19 // pred_check_branch
          %159 = sbr.rel (%p157) target = $region24
        $region23: #{tpu_custom_call.1} parent=19 // pred_region
          %s160 = sand.u32 %s42, 1
          %s161 = scalar_lea.sflag [#allocation3], %s160
          %s162 = sand.u32 %s42, 1
          %s163 = smul.addr %s162, 8
          %s164 = scalar_lea.vmem [#allocation2], %s163
          %166 = vsyncadd %s161, 0
          %s167 = smul.addr %s25, 4
          %s168 = sadd.s32 %s26, %s167
          %s169 = smul.addr %s168, 2
          %s170 = scalar_lea.hbm %s0, %s169
          %s171 = sshll.u32 %s170, 4
          %s172 = int_to_ptr.hbm [resolvable:$true] %s171
          %s173 = sshll.u32 %s164, 4
          %s174 = int_to_ptr.vmem [resolvable:$true] %s173
          %179 = dma.hbm_to_vmem [thread:$0]  %s172, 128, %s174, %s161, 32, 32, 2
        $region24: #{tpu_custom_call.1} parent=19 // pred_fallthru
          _
        // Predicated region
        $region25: #{tpu_custom_call.1} parent=19 // pred_check
          %p180 = pneg %p80
        $region26: #{tpu_custom_call.1} parent=19 // pred_check_branch
          %182 = sbr.rel (%p180) target = $region28
        $region27: #{tpu_custom_call.1} parent=19 // pred_region
          %s183 = sand.u32 %s70, 1
          %s184 = scalar_lea.sflag [#allocation6], %s183
          %s185 = sand.u32 %s70, 1
          %s186 = smul.addr %s185, 8
          %s187 = scalar_lea.vmem [#allocation5], %s186
          %189 = vsyncadd %s184, 0
          %s190 = smul.addr %s25, 4
          %s191 = sadd.s32 %s26, %s190
          %s192 = smul.addr %s191, 2
          %s193 = scalar_lea.hbm %s1, %s192
          %s194 = sshll.u32 %s193, 4
          %s195 = int_to_ptr.hbm [resolvable:$true] %s194
          %s196 = sshll.u32 %s187, 4
          %s197 = int_to_ptr.vmem [resolvable:$true] %s196
          %202 = dma.hbm_to_vmem [thread:$0]  %s195, 128, %s197, %s184, 32, 32, 2
        $region28: #{tpu_custom_call.1} parent=19 // pred_fallthru
          _
      $region20: #{tpu_custom_call.1} parent=5 // pred_fallthru
        _
      %p203 = scmp.le.s32.totalorder 1, %s18
      %p204 = scmp.lt.s32.totalorder %s18, 3
      %p205 = pnand %p203, %p204
      %p206 = pneg %p205
      // Predicated region
      $region29: #{tpu_custom_call.1} parent=5 // pred_check
        _
      $region30: #{tpu_custom_call.1} parent=5 // pred_check_branch
        %208 = sbr.rel (%p205) target = $region32
      $region31: #{tpu_custom_call.1} parent=5 // pred_region
        %s209 = ssub.s32 %s18, 1
        %s210 = sand.u32 %s45, 1
        %s211 = scalar_lea.sflag [#allocation3], %s210
        %s212 = sand.u32 %s45, 1
        %s213 = smul.addr %s212, 8
        %s214 = scalar_lea.vmem [#allocation2], %s213
        // Predicated region
        $region33: #{tpu_custom_call.1} parent=31 // pred_check
          %p215 = pneg %p58
        $region34: #{tpu_custom_call.1} parent=31 // pred_check_branch
          %217 = sbr.rel (%p215) target = $region36
        $region35: #{tpu_custom_call.1} parent=31 // pred_region
          %219 = dma.done %s211, 128
        $region36: #{tpu_custom_call.1} parent=31 // pred_fallthru
          _
        %s220 = sand.u32 %s73, 1
        %s221 = scalar_lea.sflag [#allocation6], %s220
        %s222 = sand.u32 %s73, 1
        %s223 = smul.addr %s222, 8
        %s224 = scalar_lea.vmem [#allocation5], %s223
        // Predicated region
        $region37: #{tpu_custom_call.1} parent=31 // pred_check
          %p225 = pneg %p86
        $region38: #{tpu_custom_call.1} parent=31 // pred_check_branch
          %227 = sbr.rel (%p225) target = $region40
        $region39: #{tpu_custom_call.1} parent=31 // pred_region
          %229 = dma.done %s221, 128
        $region40: #{tpu_custom_call.1} parent=31 // pred_fallthru
          _
        %s230 = sand.u32 %s45, 1
        %s231 = scalar_lea.sflag [#allocation3], %s230
        %s232 = sand.u32 %s45, 1
        %s233 = smul.addr %s232, 8
        %s234 = scalar_lea.vmem [#allocation2], %s233
        %p235 = pneg %p58
        %p236 = pneg %p55
        %s237 = sand.u32 %s73, 1
        %s238 = scalar_lea.sflag [#allocation6], %s237
        %s239 = sand.u32 %s73, 1
        %s240 = smul.addr %s239, 8
        %s241 = scalar_lea.vmem [#allocation5], %s240
        %p242 = pneg %p86
        %p243 = pneg %p83
        %p244 = pneg %p107
        %p245 = pneg %p104
        %p246 = pneg %p135
        %p247 = pneg %p132
        %s248 = sand.u32 %s122, 1
        %s249 = scalar_lea.sflag [#allocation4], %s248
        %s250 = sand.u32 %s122, 1
        %s251 = smul.addr %s250, 2
        %s252 = scalar_lea.vmem [#allocation7], %s251
        %v253 = vld [vmem:[%s214] sm:$0x3]
        %v254 = vld [vmem:[%s214 + $0x2] sm:$0x3]
        %v255 = vld [vmem:[%s214 + $0x4] sm:$0x3]
        %v256 = vld [vmem:[%s214 + $0x6] sm:$0x3]
        %v257 = vld [vmem:[%s224] sm:$0x3]
        %v258 = vld [vmem:[%s224 + $0x2] sm:$0x3]
        %v259 = vld [vmem:[%s224 + $0x4] sm:$0x3]
        %v260 = vld [vmem:[%s224 + $0x6] sm:$0x3]
        %vm261 = vcmask 1041408
        %v262 = vsel %vm261, %v253, -inf
        %v263 = vsel %vm261, %v254, -inf
        %v264 = vsel %vm261, %v255, -inf
        %v265 = vsel %vm261, %v256, -inf
        %v266 = vmax.f32 %v262, %v263
        %v267 = vmax.f32 %v264, %v265
        %v268 = vmax.f32 %v266, %v267
        %v269 = vsub.f32 %v253, %v268
        %v270 = vsub.f32 %v254, %v268
        %v271 = vsub.f32 %v255, %v268
        %v272 = vsub.f32 %v256, %v268
        %v273 = vmul.f32 %v269, 1.442695
        %v274 = vpow.pop %v273
        %v275 = vmul.f32 %v270, 1.442695
        %v276 = vpow.pop %v275
        %v277 = vmul.f32 %v271, 1.442695
        %v278 = vpow.pop %v277
        %v279 = vmul.f32 %v272, 1.442695
        %v280 = vpow.pop %v279
        %v281 = vsel %vm261, %v274, 0.0
        %v282 = vsel %vm261, %v276, 0.0
        %v283 = vadd.f32 %v281, %v282
        %v284 = vsel %vm261, %v278, 0.0
        %v285 = vadd.f32 %v283, %v284
        %v286 = vsel %vm261, %v280, 0.0
        %v287 = vadd.f32 %v285, %v286
        %v288 = vlog2.pop %v287
        %v289 = vmul.f32 %v288, 0.6931472
        %v290 = vld [vmem:[%s2] sm:$0x1]
        %v291 = vld [vmem:[%s2 + $0x1] sm:$0x1]
        %v292 = vld [vmem:[%s2 + $0x2] sm:$0x1]
        %v293 = vld [vmem:[%s2 + $0x3] sm:$0x1]
        %v294 = vsub.f32 %v269, %v289
        %v295 = vsub.f32 %v270, %v289
        %v296 = vsub.f32 %v271, %v289
        %v297 = vsub.f32 %v272, %v289
        %v298 = vrcp.pop %v287
        %v299 = vmul.f32 %v287, %v298
        %v300 = vsub.f32 2.0, %v299
        %v301 = vmul.f32 %v298, %v300
        %v302 = vmul.f32 %v274, %v301
        %v303 = vmul.f32 %v276, %v301
        %v304 = vmul.f32 %v278, %v301
        %v305 = vmul.f32 %v280, %v301
        %v306 = vsub.f32 1.0, %v302
        %v307 = vsub.f32 1.0, %v303
        %v308 = vsub.f32 1.0, %v304
        %v309 = vsub.f32 1.0, %v305
        %v310 = vmax.f32 %v306, 0.0
        %v311 = vmax.f32 %v307, 0.0
        %v312 = vmax.f32 %v308, 0.0
        %v313 = vmax.f32 %v309, 0.0
        %v314 = vmul.f32 %v310, %v310
        %v315 = vmul.f32 %v311, %v311
        %v316 = vmul.f32 %v312, %v312
        %v317 = vmul.f32 %v313, %v313
        %v318 = vmul.f32 %v257, %v294
        %v319 = vmul.f32 %v258, %v295
        %v320 = vmul.f32 %v259, %v296
        %v321 = vmul.f32 %v260, %v297
        %v322 = vsub.f32 0.0, %v318
        %v323 = vsub.f32 0.0, %v319
        %v324 = vsub.f32 0.0, %v320
        %v325 = vsub.f32 0.0, %v321
        %v326 = vmul.f32 %v322, %v314
        %v327 = vmul.f32 %v323, %v315
        %v328 = vmul.f32 %v324, %v316
        %v329 = vmul.f32 %v325, %v317
        %v334 = vperm.slane %v290, 0
        %v335 = vperm.slane %v291, 0
        %v336 = vperm.slane %v292, 0
        %v337 = vperm.slane %v293, 0
        %338 = vset.pattern.permute.xlu0 0
        %339 = vperm.xlu0 %338, %v334
        %v340 = vpop.permute.xlu0 %339
        %342 = vset.pattern.permute.xlu0 0
        %343 = vperm.xlu0 %342, %v335
        %v344 = vpop.permute.xlu0 %343
        %346 = vset.pattern.permute.xlu0 0
        %347 = vperm.xlu0 %346, %v336
        %v348 = vpop.permute.xlu0 %347
        %350 = vset.pattern.permute.xlu0 0
        %351 = vperm.xlu0 %350, %v337
        %v352 = vpop.permute.xlu0 %351
        %v354 = vmul.f32 %v326, %v340
        %v355 = vmul.f32 %v327, %v344
        %v356 = vmul.f32 %v328, %v348
        %v357 = vmul.f32 %v329, %v352
        %v358 = vsel %vm261, %v354, 0.0
        %v359 = vsel %vm261, %v355, 0.0
        %v360 = vadd.f32 %v358, %v359
        %v361 = vsel %vm261, %v356, 0.0
        %v362 = vadd.f32 %v360, %v361
        %v363 = vsel %vm261, %v357, 0.0
        %v364 = vadd.f32 %v362, %v363
        %365 = vst [vmem:[%s252] sm:$0x3] %v364
        %s366 = sand.u32 %s122, 1
        %s367 = scalar_lea.sflag [#allocation4], %s366
        %s368 = sand.u32 %s122, 1
        %s369 = smul.addr %s368, 2
        %s370 = scalar_lea.vmem [#allocation7], %s369
        // Predicated region
        $region41: #{tpu_custom_call.1} parent=31 // pred_check
          %p371 = pneg %p132
        $region42: #{tpu_custom_call.1} parent=31 // pred_check_branch
          %373 = sbr.rel (%p371) target = $region44
        $region43: #{tpu_custom_call.1} parent=31 // pred_region
          %375 = vsyncadd %s367, 0
          %s376 = sadd.s32 %s28, %s27
          %s377 = smul.addr %s376, 2
          %s378 = scalar_lea.hbm %s3, %s377
          %s380 = sshll.u32 %s370, 4
          %s381 = int_to_ptr.vmem [resolvable:$true] %s380
          %s382 = sshll.u32 %s378, 4
          %s383 = int_to_ptr.hbm [resolvable:$true] %s382
          %385 = dma.vmem_to_hbm [thread:$0]  %s381, 32, %s383, %s367
        $region44: #{tpu_custom_call.1} parent=31 // pred_fallthru
          _
      $region32: #{tpu_custom_call.1} parent=5 // pred_fallthru
        _
      %p386 = scmp.le.s32.totalorder 2, %s18
      // Predicated region
      $region45: #{tpu_custom_call.1} parent=5 // pred_check
        %p387 = pneg %p386
      $region46: #{tpu_custom_call.1} parent=5 // pred_check_branch
        %389 = sbr.rel (%p387) target = $region48
      $region47: #{tpu_custom_call.1} parent=5 // pred_region
        %s390 = ssub.s32 %s18, 2
        // Predicated region
        $region49: #{tpu_custom_call.1} parent=47 // pred_check
          %p391 = pneg %p138
        $region50: #{tpu_custom_call.1} parent=47 // pred_check_branch
          %393 = sbr.rel (%p391) target = $region52
        $region51: #{tpu_custom_call.1} parent=47 // pred_region
          %s394 = sand.u32 %s123, 1
          %s395 = scalar_lea.sflag [#allocation4], %s394
          %s396 = sand.u32 %s123, 1
          %s397 = smul.addr %s396, 2
          %s398 = scalar_lea.vmem [#allocation7], %s397
          %400 = dma.done %s395, 32
        $region52: #{tpu_custom_call.1} parent=47 // pred_fallthru
          _
      $region48: #{tpu_custom_call.1} parent=5 // pred_fallthru
        _
    $region6: #{tpu_custom_call.1} parent=1 // loop_footer
      %s22 = sadd.s32 1, %s18
    $region7: #{tpu_custom_call.1} parent=1 // loop_footer_branch
      %17 = sbr.rel target = $region3
    $region8: #{tpu_custom_call.1} parent=1 // loop_exit
      _
    %401 = vsyncpa [#allocation3], 1
    %s402 = scalar_lea.sflag [#allocation3], 1
    %403 = vsyncpa %s402, 1
    %404 = vsyncpa [#allocation6], 1
    %s405 = scalar_lea.sflag [#allocation6], 1
    %406 = vsyncpa %s405, 1
    %407 = vsyncpa [#allocation4], 1
    %s408 = scalar_lea.sflag [#allocation4], 1
    %409 = vsyncpa %s408, 1

</llo_original>
